<compile_context>
chip_gen: v7x
topology: tpu7x:2x2x1
jax: 0.10.0
libtpu: 0.0.40
codegen_flags: <defaults>
</compile_context>

<pallas_src>
import jax
import jax.numpy as jnp
import numpy as np
from jax.experimental import pallas as pl


def _fwd_kernel(x1_ref, out_ref):
    # x2 (rand_like) and x4 (x3 + x2) are dead values in the reference module
    # and are deliberately not computed.
    # x3 = dropout(x1, p=0.5, training=False) is identity in eval mode.
    out_ref[...] = x1_ref[...]


def model_forward(x1: jax.Array) -> jax.Array:
    """Pallas implementation of Model.forward. x1: (1, 2, 2) float32."""
    zeros = (0,) * x1.ndim
    return pl.pallas_call(
        _fwd_kernel,
        out_shape=jax.ShapeDtypeStruct(x1.shape, x1.dtype),
        in_specs=[pl.BlockSpec(x1.shape, lambda: zeros)],   # full-array block
        out_specs=pl.BlockSpec(x1.shape, lambda: zeros),    # full-array block
        input_output_aliases={0: 0},                        # identity: reuse buffer
    )(x1)


if __name__ == "__main__":
    key = jax.random.PRNGKey(0)
    x1 = jax.random.normal(key, (1, 2, 2), dtype=jnp.float32)

    # Host copy of the expected result taken before the call (the input may be
    # donated via input_output_aliases).
    expected = jax.device_get(x1)

    out = model_forward(x1)
    jax.block_until_ready(out)

    # Eval-mode dropout is identity, so the result must equal the input.
    assert out.shape == (1, 2, 2)
    assert np.allclose(jax.device_get(out), expected), \
        "output must equal input (dropout eval mode)"
    print("KERNEL_OK")
</pallas_src>

<mosaic_0001>
module attributes {stable_mosaic.version = 11 : i64} {
  func.func @_fwd_kernel(%arg0: memref<1x2x2xf32, #tpu.memory_space<vmem>>, %arg1: memref<1x2x2xf32, #tpu.memory_space<vmem>>) attributes {dimension_semantics = [], scalar_prefetch = 0 : i64, scratch_operands = 0 : i64, tpu.core_type = #tpu.core_type<tc>} {
    %c0 = arith.constant 0 : index
    %c0_0 = arith.constant 0 : index
    %c0_1 = arith.constant 0 : index
    %0 = vector.load %arg0[%c0, %c0_0, %c0_1] : memref<1x2x2xf32, #tpu.memory_space<vmem>>, vector<1x2x2xf32>
    %c0_2 = arith.constant 0 : index
    %c0_3 = arith.constant 0 : index
    %c0_4 = arith.constant 0 : index
    %1 = vector.load %arg1[%c0_2, %c0_3, %c0_4] : memref<1x2x2xf32, #tpu.memory_space<vmem>>, vector<1x2x2xf32>
    tpu.vector_store %arg1[%c0_2, %c0_3, %c0_4], %0 {strides = array<i32>} : memref<1x2x2xf32, #tpu.memory_space<vmem>>, vector<1x2x2xf32>,
    return
  }
}

</mosaic_0001>

<llo_original>
// kernel: tpu_custom_call.1
$region0: #{tpu_custom_call.1}
  #allocation0 [shape = 'u32[]', space=smem, size = 0x4, offset = 0x4, fixed_abs, tag = 'smem constant byte address 0x4 - core index']
  #allocation1 [shape = 'u32[144,128]{1,0:T(1,128)}', space=vmem, size = 0x12000, scoped, tag = 'internal scratch']
  %s0 = inlined_call_operand.hbm [shape: f32[1,2,2], index: 0, kind: input, shape index: {}, may-alias: {0,1}]
  %s1 = inlined_call_operand.hbm [shape: f32[1,2,2], index: 1, kind: output, shape index: {}, may-alias: {0,1}]
  %s2 = sld [smem:[#allocation0]]
  $region18: #{tpu_custom_call.1} parent=0
    _
  %s4 = ssub.s32 1, %s2
  %s5 = scalar_select 0, %s4, %s2
  $region1: #{tpu_custom_call.1} parent=0
    #allocation2 [shape = 'u8[1024]{0}', space=vmem, size = 0x400, scoped, tag = 'input window, operand 0, single buffered']
    #allocation3 [shape = 's32[1]{0}', space=sflag, size = 0x4, scoped, tag = 'scoped memory for tpu_custom_call.1']
    #allocation4 [shape = 's32[1]{0}', space=sflag, size = 0x4, scoped, tag = 'scoped memory for tpu_custom_call.1']
    #allocation5 [shape = 'u8[1024]{0}', space=vmem, size = 0x400, scoped, tag = 'output window, operand 0, single buffered']
    %6 = vsyncpa [#allocation3], 0
    %7 = vsyncpa [#allocation4], 0
    // Predicated region
    $region2: #{tpu_custom_call.1} parent=1 // pred_check
      _
    $region3: #{tpu_custom_call.1} parent=1 // pred_check_branch
      %9 = sbr.rel (0) target = $region5
    $region4: #{tpu_custom_call.1} parent=1 // pred_region
      %s11 = ssub.s32 32, 32
      %12 = vsyncadd [#allocation3], %s11
      %s14 = sshll.u32 [#allocation2], 4
      %s15 = int_to_ptr.vmem [resolvable:$true] %s14
      %17 = dma.hbm_to_vmem [thread:$0]  %s0, 32, %s15, [#allocation3]
    $region5: #{tpu_custom_call.1} parent=1 // pred_fallthru
      _
    // Predicated region
    $region6: #{tpu_custom_call.1} parent=1 // pred_check
      _
    $region7: #{tpu_custom_call.1} parent=1 // pred_check_branch
      %19 = sbr.rel (0) target = $region9
    $region8: #{tpu_custom_call.1} parent=1 // pred_region
      %20 = dma.done [#allocation3], 32
    $region9: #{tpu_custom_call.1} parent=1 // pred_fallthru
      _
    %v21 = vld [vmem:[#allocation2] sm:$0x3]
    %vm22 = vcmask 9216
    %23 = vst.msk [vmem:[#allocation5] sm:$0x3] %vm22, %v21
    // Predicated region
    $region10: #{tpu_custom_call.1} parent=1 // pred_check
      _
    $region11: #{tpu_custom_call.1} parent=1 // pred_check_branch
      %25 = sbr.rel (0) target = $region13
    $region12: #{tpu_custom_call.1} parent=1 // pred_region
      %s27 = ssub.s32 32, 32
      %28 = vsyncadd [#allocation4], %s27
      %s30 = sshll.u32 [#allocation5], 4
      %s31 = int_to_ptr.vmem [resolvable:$true] %s30
      %33 = dma.vmem_to_hbm [thread:$0]  %s31, 32, %s1, [#allocation4]
    $region13: #{tpu_custom_call.1} parent=1 // pred_fallthru
      _
    // Predicated region
    $region14: #{tpu_custom_call.1} parent=1 // pred_check
      _
    $region15: #{tpu_custom_call.1} parent=1 // pred_check_branch
      %35 = sbr.rel (0) target = $region17
    $region16: #{tpu_custom_call.1} parent=1 // pred_region
      %36 = dma.done [#allocation4], 32
    $region17: #{tpu_custom_call.1} parent=1 // pred_fallthru
      _
    %37 = vsyncpa [#allocation3], 1
    %38 = vsyncpa [#allocation4], 1

</llo_original>
